<compile_context>
chip_gen: v6e
topology: v6e:2x2x1
jax: 0.10.0
libtpu: 0.0.40
codegen_flags: <defaults>
</compile_context>

<pallas_src>
import jax
import jax.numpy as jnp
import numpy as np
from jax.experimental import pallas as pl
from jax.experimental.pallas import tpu as pltpu


def ising_kernel(x_ref, o_ref):
    """x_ref/o_ref: (H, W, TB) tiles in VMEM; batch (TB) is the lane axis."""
    x = x_ref[...]
    # Fixed Ising "cross" stencil, unit weights, circular wrap.  The block
    # spans the full lattice in H and W, so wrapping at the block edge IS the
    # lattice's circular boundary.  axis 0 = H (major), axis 1 = W (sublane):
    # no lane-axis data movement at all.
    conv = (jnp.roll(x, 1, axis=0) + jnp.roll(x, -1, axis=0)
            + jnp.roll(x, 1, axis=1) + jnp.roll(x, -1, axis=1))
    o_ref[...] = (-x * conv).astype(o_ref.dtype)


def _pick_batch_tile(n, h, w, itemsize):
    """Lane-dense batch tile: ~4 MiB per block (=> ~16 MiB with in+out double
    buffering), last block dim either a multiple of 128 or the full batch."""
    target_bytes = 4 * 1024 * 1024
    per_lattice = h * w * itemsize
    cap = max(1, target_bytes // per_lattice)
    if n <= cap:
        return n                      # whole batch in one block (grid of 1)
    tb = (cap // 128) * 128           # lane-aligned tile (last dim % 128 == 0)
    if tb == 0:
        # Single lattice already exceeds the per-block target; fall back to the
        # full batch so the BlockSpec stays legal.
        # TODO(synk): tile H with explicit circular-halo DMA for lattices too
        # large to keep whole in VMEM (required on v7x's 64 MiB VMEM).
        return n
    return tb


def ising_forward(x):
    """x: (N, 1, H, W) -> (N, 1, H, W), out = -x * cross_conv(circular_pad(x))."""
    N, C, H, W = x.shape
    assert C == 1, "Ising module uses a single channel"

    # Lane-dense relayout: (N,1,H,W) -> (H, W, N); batch on lanes.
    xt = jnp.transpose(x.reshape(N, H, W), (1, 2, 0))

    tb = _pick_batch_tile(N, H, W, xt.dtype.itemsize)
    grid = (pl.cdiv(N, tb),)

    out = pl.pallas_call(
        ising_kernel,
        out_shape=jax.ShapeDtypeStruct((H, W, N), x.dtype),
        grid=grid,
        in_specs=[pl.BlockSpec((H, W, tb), lambda n: (0, 0, n))],
        out_specs=pl.BlockSpec((H, W, tb), lambda n: (0, 0, n)),
        compiler_params=pltpu.CompilerParams(
            dimension_semantics=("parallel",),   # shards grid over both TCs on v7x
            vmem_limit_bytes=32 * 1024 * 1024,
        ),
    )(xt)

    # (H, W, N) -> (N, 1, H, W)
    return jnp.transpose(out, (2, 0, 1)).reshape(N, C, H, W)


def ising_ref(x, weight):
    """Pure-JAX reference mirroring the PyTorch module exactly (generic 3x3)."""
    xs = x[:, 0]                                     # (N, H, W)
    conv = jnp.zeros_like(xs)
    for a in range(3):
        for b in range(3):
            conv = conv + weight[a, b] * jnp.roll(
                jnp.roll(xs, 1 - a, axis=1), 1 - b, axis=2)
    return (-xs * conv)[:, None, :, :]


if __name__ == "__main__":
    # The exact fixed conv weight from Ising.__init__ (used only by the reference;
    # the kernel is specialized to this cross stencil).
    weight = (jnp.zeros((3, 3), dtype=jnp.float32)
              .at[0, 1].set(1.0)
              .at[1, 0].set(1.0)
              .at[1, 2].set(1.0)
              .at[2, 1].set(1.0))

    # Small deterministic input: batch=2, channels=1, 16x16 lattice of +-1 spins.
    key = jax.random.PRNGKey(0)
    spins = jnp.where(jax.random.bernoulli(key, 0.5, (2, 1, 16, 16)),
                      1.0, -1.0).astype(jnp.float32)

    out = ising_forward(spins)
    out = jax.block_until_ready(out)

    ref = ising_ref(spins, weight)
    np.testing.assert_allclose(np.asarray(out), np.asarray(ref),
                               rtol=1e-6, atol=1e-6)
    print("KERNEL_OK")
</pallas_src>

<mosaic_0001>
module attributes {stable_mosaic.version = 11 : i64} {
  func.func @ising_kernel(%arg0: i32, %arg1: memref<16x16x2xf32, #tpu.memory_space<vmem>>, %arg2: memref<16x16x2xf32, #tpu.memory_space<vmem>>) attributes {dimension_semantics = [#tpu.dimension_semantics<parallel>], iteration_bounds = array<i64: 1>, scalar_prefetch = 0 : i64, scratch_operands = 0 : i64, tpu.core_type = #tpu.core_type<tc>, window_params = [{transform_indices = @transform_0, window_bounds = array<i64: 16, 16, 2>}, {transform_indices = @transform_1, window_bounds = array<i64: 16, 16, 2>}]} {
    %c0 = arith.constant 0 : index
    %c0_0 = arith.constant 0 : index
    %c0_1 = arith.constant 0 : index
    %0 = vector.load %arg1[%c0, %c0_0, %c0_1] : memref<16x16x2xf32, #tpu.memory_space<vmem>>, vector<16x16x2xf32>
    %1 = vector.extract_strided_slice %0 {offsets = [15, 0, 0], sizes = [1, 16, 2], strides = [1, 1, 1]} : vector<16x16x2xf32> to vector<1x16x2xf32>
    %2 = vector.extract_strided_slice %0 {offsets = [0, 0, 0], sizes = [15, 16, 2], strides = [1, 1, 1]} : vector<16x16x2xf32> to vector<15x16x2xf32>
    %3 = tpu.concatenate %1, %2 in 0 : vector<1x16x2xf32>, vector<15x16x2xf32> -> vector<16x16x2xf32>
    %4 = vector.extract_strided_slice %0 {offsets = [1, 0, 0], sizes = [15, 16, 2], strides = [1, 1, 1]} : vector<16x16x2xf32> to vector<15x16x2xf32>
    %5 = vector.extract_strided_slice %0 {offsets = [0, 0, 0], sizes = [1, 16, 2], strides = [1, 1, 1]} : vector<16x16x2xf32> to vector<1x16x2xf32>
    %6 = tpu.concatenate %4, %5 in 0 : vector<15x16x2xf32>, vector<1x16x2xf32> -> vector<16x16x2xf32>
    %7 = arith.addf %3, %6 : vector<16x16x2xf32>
    %8 = vector.extract_strided_slice %0 {offsets = [0, 15, 0], sizes = [16, 1, 2], strides = [1, 1, 1]} : vector<16x16x2xf32> to vector<16x1x2xf32>
    %9 = vector.extract_strided_slice %0 {offsets = [0, 0, 0], sizes = [16, 15, 2], strides = [1, 1, 1]} : vector<16x16x2xf32> to vector<16x15x2xf32>
    %10 = tpu.concatenate %8, %9 in 1 : vector<16x1x2xf32>, vector<16x15x2xf32> -> vector<16x16x2xf32>
    %11 = arith.addf %7, %10 : vector<16x16x2xf32>
    %12 = vector.extract_strided_slice %0 {offsets = [0, 1, 0], sizes = [16, 15, 2], strides = [1, 1, 1]} : vector<16x16x2xf32> to vector<16x15x2xf32>
    %13 = vector.extract_strided_slice %0 {offsets = [0, 0, 0], sizes = [16, 1, 2], strides = [1, 1, 1]} : vector<16x16x2xf32> to vector<16x1x2xf32>
    %14 = tpu.concatenate %12, %13 in 1 : vector<16x15x2xf32>, vector<16x1x2xf32> -> vector<16x16x2xf32>
    %15 = arith.addf %11, %14 : vector<16x16x2xf32>
    %cst = arith.constant 0.000000e+00 : f32
    %16 = vector.broadcast %cst : f32 to vector<16x16x2xf32>
    %17 = arith.subf %16, %0 : vector<16x16x2xf32>
    %18 = arith.mulf %17, %15 : vector<16x16x2xf32>
    %c0_2 = arith.constant 0 : index
    %c0_3 = arith.constant 0 : index
    %c0_4 = arith.constant 0 : index
    %19 = vector.load %arg2[%c0_2, %c0_3, %c0_4] : memref<16x16x2xf32, #tpu.memory_space<vmem>>, vector<16x16x2xf32>
    tpu.vector_store %arg2[%c0_2, %c0_3, %c0_4], %18 {strides = array<i32>} : memref<16x16x2xf32, #tpu.memory_space<vmem>>, vector<16x16x2xf32>,
    return
  }
  func.func @transform_0(%arg0: i32) -> (i32, i32, i32) {
    %c0_i32 = arith.constant 0 : i32
    %c0_i32_0 = arith.constant 0 : i32
    %c0_i32_1 = arith.constant 0 : i32
    return %c0_i32, %c0_i32_0, %arg0 : i32, i32, i32
  }
  func.func @transform_1(%arg0: i32) -> (i32, i32, i32) {
    %c0_i32 = arith.constant 0 : i32
    %c0_i32_0 = arith.constant 0 : i32
    %c0_i32_1 = arith.constant 0 : i32
    return %c0_i32, %c0_i32_0, %arg0 : i32, i32, i32
  }
}

</mosaic_0001>

<llo_original>
// kernel: tpu_custom_call.1
$region0: #{tpu_custom_call.1}
  #allocation0 [shape = 'u32[]', space=smem, size = 0x4, offset = 0x4, fixed_abs, tag = 'smem constant byte address 0x4 - core index']
  #allocation1 [shape = 'u32[144,128]{1,0:T(1,128)}', space=vmem, size = 0x12000, scoped, tag = 'internal scratch']
  %s0 = inlined_call_operand.vmem [shape: f32[16,16,2], index: 0, kind: input, shape index: {}]
  %s1 = inlined_call_operand.vmem [shape: f32[16,16,2], index: 1, kind: output, shape index: {}]
  %s2 = sld [smem:[#allocation0]]
  $region14: #{tpu_custom_call.1} parent=0
    _
  %s4 = ssub.s32 1, %s2
  %s5 = scalar_select 0, %s4, %s2
  // Predicated region
  $region2: #{tpu_custom_call.1} parent=0 // pred_check
    _
  $region3: #{tpu_custom_call.1} parent=0 // pred_check_branch
    %7 = sbr.rel (0) target = $region5
  $region4: #{tpu_custom_call.1} parent=0 // pred_region
    _
  $region5: #{tpu_custom_call.1} parent=0 // pred_fallthru
    _
  %v8 = vld [vmem:[%s0] sm:$0xff]
  %v9 = vld [vmem:[%s0 + $0x8] sm:$0xff]
  %v10 = vld [vmem:[%s0 + $0x10] sm:$0xff]
  %v11 = vld [vmem:[%s0 + $0x18] sm:$0xff]
  %v12 = vld [vmem:[%s0 + $0x20] sm:$0xff]
  %v13 = vld [vmem:[%s0 + $0x28] sm:$0xff]
  %v14 = vld [vmem:[%s0 + $0x30] sm:$0xff]
  %v15 = vld [vmem:[%s0 + $0x38] sm:$0xff]
  %v16 = vld [vmem:[%s0 + $0x40] sm:$0xff]
  %v17 = vld [vmem:[%s0 + $0x48] sm:$0xff]
  %v18 = vld [vmem:[%s0 + $0x50] sm:$0xff]
  %v19 = vld [vmem:[%s0 + $0x58] sm:$0xff]
  %v20 = vld [vmem:[%s0 + $0x60] sm:$0xff]
  %v21 = vld [vmem:[%s0 + $0x68] sm:$0xff]
  %v22 = vld [vmem:[%s0 + $0x70] sm:$0xff]
  %v23 = vld [vmem:[%s0 + $0x78] sm:$0xff]
  %v24 = vld [vmem:[%s0 + $0x80] sm:$0xff]
  %v25 = vld [vmem:[%s0 + $0x88] sm:$0xff]
  %v26 = vld [vmem:[%s0 + $0x90] sm:$0xff]
  %v27 = vld [vmem:[%s0 + $0x98] sm:$0xff]
  %v28 = vld [vmem:[%s0 + $0xa0] sm:$0xff]
  %v29 = vld [vmem:[%s0 + $0xa8] sm:$0xff]
  %v30 = vld [vmem:[%s0 + $0xb0] sm:$0xff]
  %v31 = vld [vmem:[%s0 + $0xb8] sm:$0xff]
  %v32 = vld [vmem:[%s0 + $0xc0] sm:$0xff]
  %v33 = vld [vmem:[%s0 + $0xc8] sm:$0xff]
  %v34 = vld [vmem:[%s0 + $0xd0] sm:$0xff]
  %v35 = vld [vmem:[%s0 + $0xd8] sm:$0xff]
  %v36 = vld [vmem:[%s0 + $0xe0] sm:$0xff]
  %v37 = vld [vmem:[%s0 + $0xe8] sm:$0xff]
  %v38 = vld [vmem:[%s0 + $0xf0] sm:$0xff]
  %v39 = vld [vmem:[%s0 + $0xf8] sm:$0xff]
  %v40 = vadd.f32 %v38, %v10
  %v41 = vadd.f32 %v39, %v11
  %v42 = vadd.f32 %v8, %v12
  %v43 = vadd.f32 %v9, %v13
  %v44 = vadd.f32 %v10, %v14
  %v45 = vadd.f32 %v11, %v15
  %v46 = vadd.f32 %v12, %v16
  %v47 = vadd.f32 %v13, %v17
  %v48 = vadd.f32 %v14, %v18
  %v49 = vadd.f32 %v15, %v19
  %v50 = vadd.f32 %v16, %v20
  %v51 = vadd.f32 %v17, %v21
  %v52 = vadd.f32 %v18, %v22
  %v53 = vadd.f32 %v19, %v23
  %v54 = vadd.f32 %v20, %v24
  %v55 = vadd.f32 %v21, %v25
  %v56 = vadd.f32 %v22, %v26
  %v57 = vadd.f32 %v23, %v27
  %v58 = vadd.f32 %v24, %v28
  %v59 = vadd.f32 %v25, %v29
  %v60 = vadd.f32 %v26, %v30
  %v61 = vadd.f32 %v27, %v31
  %v62 = vadd.f32 %v28, %v32
  %v63 = vadd.f32 %v29, %v33
  %v64 = vadd.f32 %v30, %v34
  %v65 = vadd.f32 %v31, %v35
  %v66 = vadd.f32 %v32, %v36
  %v67 = vadd.f32 %v33, %v37
  %v68 = vadd.f32 %v34, %v38
  %v69 = vadd.f32 %v35, %v39
  %v70 = vadd.f32 %v36, %v8
  %v71 = vadd.f32 %v37, %v9
  %v88 = vrot.slane %v9, 7
  %v89 = vrot.slane %v11, 7
  %v90 = vrot.slane %v13, 7
  %v91 = vrot.slane %v15, 7
  %v92 = vrot.slane %v17, 7
  %v93 = vrot.slane %v19, 7
  %v94 = vrot.slane %v21, 7
  %v95 = vrot.slane %v23, 7
  %v96 = vrot.slane %v25, 7
  %v97 = vrot.slane %v27, 7
  %v98 = vrot.slane %v29, 7
  %v99 = vrot.slane %v31, 7
  %v100 = vrot.slane %v33, 7
  %v101 = vrot.slane %v35, 7
  %v102 = vrot.slane %v37, 7
  %v103 = vrot.slane %v39, 7
  %vm136 = vcmask 1040384
  %v137 = vrot.slane %v8, 7
  %v138 = vsel %vm136, %v137, %v88
  %v139 = vrot.slane %v10, 7
  %v140 = vsel %vm136, %v139, %v89
  %v141 = vrot.slane %v12, 7
  %v142 = vsel %vm136, %v141, %v90
  %v143 = vrot.slane %v14, 7
  %v144 = vsel %vm136, %v143, %v91
  %v145 = vrot.slane %v16, 7
  %v146 = vsel %vm136, %v145, %v92
  %v147 = vrot.slane %v18, 7
  %v148 = vsel %vm136, %v147, %v93
  %v149 = vrot.slane %v20, 7
  %v150 = vsel %vm136, %v149, %v94
  %v151 = vrot.slane %v22, 7
  %v152 = vsel %vm136, %v151, %v95
  %v153 = vrot.slane %v24, 7
  %v154 = vsel %vm136, %v153, %v96
  %v155 = vrot.slane %v26, 7
  %v156 = vsel %vm136, %v155, %v97
  %v157 = vrot.slane %v28, 7
  %v158 = vsel %vm136, %v157, %v98
  %v159 = vrot.slane %v30, 7
  %v160 = vsel %vm136, %v159, %v99
  %v161 = vrot.slane %v32, 7
  %v162 = vsel %vm136, %v161, %v100
  %v163 = vrot.slane %v34, 7
  %v164 = vsel %vm136, %v163, %v101
  %v165 = vrot.slane %v36, 7
  %v166 = vsel %vm136, %v165, %v102
  %v167 = vrot.slane %v38, 7
  %v168 = vsel %vm136, %v167, %v103
  %v201 = vsel %vm136, %v88, %v137
  %v202 = vsel %vm136, %v89, %v139
  %v203 = vsel %vm136, %v90, %v141
  %v204 = vsel %vm136, %v91, %v143
  %v205 = vsel %vm136, %v92, %v145
  %v206 = vsel %vm136, %v93, %v147
  %v207 = vsel %vm136, %v94, %v149
  %v208 = vsel %vm136, %v95, %v151
  %v209 = vsel %vm136, %v96, %v153
  %v210 = vsel %vm136, %v97, %v155
  %v211 = vsel %vm136, %v98, %v157
  %v212 = vsel %vm136, %v99, %v159
  %v213 = vsel %vm136, %v100, %v161
  %v214 = vsel %vm136, %v101, %v163
  %v215 = vsel %vm136, %v102, %v165
  %v216 = vsel %vm136, %v103, %v167
  %v217 = vadd.f32 %v40, %v201
  %v218 = vadd.f32 %v41, %v138
  %v219 = vadd.f32 %v42, %v202
  %v220 = vadd.f32 %v43, %v140
  %v221 = vadd.f32 %v44, %v203
  %v222 = vadd.f32 %v45, %v142
  %v223 = vadd.f32 %v46, %v204
  %v224 = vadd.f32 %v47, %v144
  %v225 = vadd.f32 %v48, %v205
  %v226 = vadd.f32 %v49, %v146
  %v227 = vadd.f32 %v50, %v206
  %v228 = vadd.f32 %v51, %v148
  %v229 = vadd.f32 %v52, %v207
  %v230 = vadd.f32 %v53, %v150
  %v231 = vadd.f32 %v54, %v208
  %v232 = vadd.f32 %v55, %v152
  %v233 = vadd.f32 %v56, %v209
  %v234 = vadd.f32 %v57, %v154
  %v235 = vadd.f32 %v58, %v210
  %v236 = vadd.f32 %v59, %v156
  %v237 = vadd.f32 %v60, %v211
  %v238 = vadd.f32 %v61, %v158
  %v239 = vadd.f32 %v62, %v212
  %v240 = vadd.f32 %v63, %v160
  %v241 = vadd.f32 %v64, %v213
  %v242 = vadd.f32 %v65, %v162
  %v243 = vadd.f32 %v66, %v214
  %v244 = vadd.f32 %v67, %v164
  %v245 = vadd.f32 %v68, %v215
  %v246 = vadd.f32 %v69, %v166
  %v247 = vadd.f32 %v70, %v216
  %v248 = vadd.f32 %v71, %v168
  %vm249 = vcmask 1046528
  %v250 = vrot.slane %v8, 1
  %v251 = vrot.slane %v9, 1
  %v252 = vsel %vm249, %v250, %v251
  %v253 = vrot.slane %v10, 1
  %v254 = vrot.slane %v11, 1
  %v255 = vsel %vm249, %v253, %v254
  %v256 = vrot.slane %v12, 1
  %v257 = vrot.slane %v13, 1
  %v258 = vsel %vm249, %v256, %v257
  %v259 = vrot.slane %v14, 1
  %v260 = vrot.slane %v15, 1
  %v261 = vsel %vm249, %v259, %v260
  %v262 = vrot.slane %v16, 1
  %v263 = vrot.slane %v17, 1
  %v264 = vsel %vm249, %v262, %v263
  %v265 = vrot.slane %v18, 1
  %v266 = vrot.slane %v19, 1
  %v267 = vsel %vm249, %v265, %v266
  %v268 = vrot.slane %v20, 1
  %v269 = vrot.slane %v21, 1
  %v270 = vsel %vm249, %v268, %v269
  %v271 = vrot.slane %v22, 1
  %v272 = vrot.slane %v23, 1
  %v273 = vsel %vm249, %v271, %v272
  %v274 = vrot.slane %v24, 1
  %v275 = vrot.slane %v25, 1
  %v276 = vsel %vm249, %v274, %v275
  %v277 = vrot.slane %v26, 1
  %v278 = vrot.slane %v27, 1
  %v279 = vsel %vm249, %v277, %v278
  %v280 = vrot.slane %v28, 1
  %v281 = vrot.slane %v29, 1
  %v282 = vsel %vm249, %v280, %v281
  %v283 = vrot.slane %v30, 1
  %v284 = vrot.slane %v31, 1
  %v285 = vsel %vm249, %v283, %v284
  %v286 = vrot.slane %v32, 1
  %v287 = vrot.slane %v33, 1
  %v288 = vsel %vm249, %v286, %v287
  %v289 = vrot.slane %v34, 1
  %v290 = vrot.slane %v35, 1
  %v291 = vsel %vm249, %v289, %v290
  %v292 = vrot.slane %v36, 1
  %v293 = vrot.slane %v37, 1
  %v294 = vsel %vm249, %v292, %v293
  %v295 = vrot.slane %v38, 1
  %v296 = vrot.slane %v39, 1
  %v297 = vsel %vm249, %v295, %v296
  %v346 = vsel %vm249, %v251, %v250
  %v347 = vsel %vm249, %v254, %v253
  %v348 = vsel %vm249, %v257, %v256
  %v349 = vsel %vm249, %v260, %v259
  %v350 = vsel %vm249, %v263, %v262
  %v351 = vsel %vm249, %v266, %v265
  %v352 = vsel %vm249, %v269, %v268
  %v353 = vsel %vm249, %v272, %v271
  %v354 = vsel %vm249, %v275, %v274
  %v355 = vsel %vm249, %v278, %v277
  %v356 = vsel %vm249, %v281, %v280
  %v357 = vsel %vm249, %v284, %v283
  %v358 = vsel %vm249, %v287, %v286
  %v359 = vsel %vm249, %v290, %v289
  %v360 = vsel %vm249, %v293, %v292
  %v361 = vsel %vm249, %v296, %v295
  %v362 = vadd.f32 %v217, %v252
  %v363 = vadd.f32 %v218, %v346
  %v364 = vadd.f32 %v219, %v255
  %v365 = vadd.f32 %v220, %v347
  %v366 = vadd.f32 %v221, %v258
  %v367 = vadd.f32 %v222, %v348
  %v368 = vadd.f32 %v223, %v261
  %v369 = vadd.f32 %v224, %v349
  %v370 = vadd.f32 %v225, %v264
  %v371 = vadd.f32 %v226, %v350
  %v372 = vadd.f32 %v227, %v267
  %v373 = vadd.f32 %v228, %v351
  %v374 = vadd.f32 %v229, %v270
  %v375 = vadd.f32 %v230, %v352
  %v376 = vadd.f32 %v231, %v273
  %v377 = vadd.f32 %v232, %v353
  %v378 = vadd.f32 %v233, %v276
  %v379 = vadd.f32 %v234, %v354
  %v380 = vadd.f32 %v235, %v279
  %v381 = vadd.f32 %v236, %v355
  %v382 = vadd.f32 %v237, %v282
  %v383 = vadd.f32 %v238, %v356
  %v384 = vadd.f32 %v239, %v285
  %v385 = vadd.f32 %v240, %v357
  %v386 = vadd.f32 %v241, %v288
  %v387 = vadd.f32 %v242, %v358
  %v388 = vadd.f32 %v243, %v291
  %v389 = vadd.f32 %v244, %v359
  %v390 = vadd.f32 %v245, %v294
  %v391 = vadd.f32 %v246, %v360
  %v392 = vadd.f32 %v247, %v297
  %v393 = vadd.f32 %v248, %v361
  %v394 = vsub.f32 0.0, %v8
  %v395 = vsub.f32 0.0, %v9
  %v396 = vsub.f32 0.0, %v10
  %v397 = vsub.f32 0.0, %v11
  %v398 = vsub.f32 0.0, %v12
  %v399 = vsub.f32 0.0, %v13
  %v400 = vsub.f32 0.0, %v14
  %v401 = vsub.f32 0.0, %v15
  %v402 = vsub.f32 0.0, %v16
  %v403 = vsub.f32 0.0, %v17
  %v404 = vsub.f32 0.0, %v18
  %v405 = vsub.f32 0.0, %v19
  %v406 = vsub.f32 0.0, %v20
  %v407 = vsub.f32 0.0, %v21
  %v408 = vsub.f32 0.0, %v22
  %v409 = vsub.f32 0.0, %v23
  %v410 = vsub.f32 0.0, %v24
  %v411 = vsub.f32 0.0, %v25
  %v412 = vsub.f32 0.0, %v26
  %v413 = vsub.f32 0.0, %v27
  %v414 = vsub.f32 0.0, %v28
  %v415 = vsub.f32 0.0, %v29
  %v416 = vsub.f32 0.0, %v30
  %v417 = vsub.f32 0.0, %v31
  %v418 = vsub.f32 0.0, %v32
  %v419 = vsub.f32 0.0, %v33
  %v420 = vsub.f32 0.0, %v34
  %v421 = vsub.f32 0.0, %v35
  %v422 = vsub.f32 0.0, %v36
  %v423 = vsub.f32 0.0, %v37
  %v424 = vsub.f32 0.0, %v38
  %v425 = vsub.f32 0.0, %v39
  %v426 = vmul.f32 %v394, %v362
  %v427 = vmul.f32 %v395, %v363
  %v428 = vmul.f32 %v396, %v364
  %v429 = vmul.f32 %v397, %v365
  %v430 = vmul.f32 %v398, %v366
  %v431 = vmul.f32 %v399, %v367
  %v432 = vmul.f32 %v400, %v368
  %v433 = vmul.f32 %v401, %v369
  %v434 = vmul.f32 %v402, %v370
  %v435 = vmul.f32 %v403, %v371
  %v436 = vmul.f32 %v404, %v372
  %v437 = vmul.f32 %v405, %v373
  %v438 = vmul.f32 %v406, %v374
  %v439 = vmul.f32 %v407, %v375
  %v440 = vmul.f32 %v408, %v376
  %v441 = vmul.f32 %v409, %v377
  %v442 = vmul.f32 %v410, %v378
  %v443 = vmul.f32 %v411, %v379
  %v444 = vmul.f32 %v412, %v380
  %v445 = vmul.f32 %v413, %v381
  %v446 = vmul.f32 %v414, %v382
  %v447 = vmul.f32 %v415, %v383
  %v448 = vmul.f32 %v416, %v384
  %v449 = vmul.f32 %v417, %v385
  %v450 = vmul.f32 %v418, %v386
  %v451 = vmul.f32 %v419, %v387
  %v452 = vmul.f32 %v420, %v388
  %v453 = vmul.f32 %v421, %v389
  %v454 = vmul.f32 %v422, %v390
  %v455 = vmul.f32 %v423, %v391
  %v456 = vmul.f32 %v424, %v392
  %v457 = vmul.f32 %v425, %v393
  %vm458 = vcmask 15360
  %459 = vst.msk [vmem:[%s1] sm:$0xff] %vm458, %v426
  %460 = vst.msk [vmem:[%s1 + $0x8] sm:$0xff] %vm458, %v427
  %461 = vst.msk [vmem:[%s1 + $0x10] sm:$0xff] %vm458, %v428
  %462 = vst.msk [vmem:[%s1 + $0x18] sm:$0xff] %vm458, %v429
  %463 = vst.msk [vmem:[%s1 + $0x20] sm:$0xff] %vm458, %v430
  %464 = vst.msk [vmem:[%s1 + $0x28] sm:$0xff] %vm458, %v431
  %465 = vst.msk [vmem:[%s1 + $0x30] sm:$0xff] %vm458, %v432
  %466 = vst.msk [vmem:[%s1 + $0x38] sm:$0xff] %vm458, %v433
  %467 = vst.msk [vmem:[%s1 + $0x40] sm:$0xff] %vm458, %v434
  %468 = vst.msk [vmem:[%s1 + $0x48] sm:$0xff] %vm458, %v435
  %469 = vst.msk [vmem:[%s1 + $0x50] sm:$0xff] %vm458, %v436
  %470 = vst.msk [vmem:[%s1 + $0x58] sm:$0xff] %vm458, %v437
  %471 = vst.msk [vmem:[%s1 + $0x60] sm:$0xff] %vm458, %v438
  %472 = vst.msk [vmem:[%s1 + $0x68] sm:$0xff] %vm458, %v439
  %473 = vst.msk [vmem:[%s1 + $0x70] sm:$0xff] %vm458, %v440
  %474 = vst.msk [vmem:[%s1 + $0x78] sm:$0xff] %vm458, %v441
  %475 = vst.msk [vmem:[%s1 + $0x80] sm:$0xff] %vm458, %v442
  %476 = vst.msk [vmem:[%s1 + $0x88] sm:$0xff] %vm458, %v443
  %477 = vst.msk [vmem:[%s1 + $0x90] sm:$0xff] %vm458, %v444
  %478 = vst.msk [vmem:[%s1 + $0x98] sm:$0xff] %vm458, %v445
  %479 = vst.msk [vmem:[%s1 + $0xa0] sm:$0xff] %vm458, %v446
  %480 = vst.msk [vmem:[%s1 + $0xa8] sm:$0xff] %vm458, %v447
  %481 = vst.msk [vmem:[%s1 + $0xb0] sm:$0xff] %vm458, %v448
  %482 = vst.msk [vmem:[%s1 + $0xb8] sm:$0xff] %vm458, %v449
  %483 = vst.msk [vmem:[%s1 + $0xc0] sm:$0xff] %vm458, %v450
  %484 = vst.msk [vmem:[%s1 + $0xc8] sm:$0xff] %vm458, %v451
  %485 = vst.msk [vmem:[%s1 + $0xd0] sm:$0xff] %vm458, %v452
  %486 = vst.msk [vmem:[%s1 + $0xd8] sm:$0xff] %vm458, %v453
  %487 = vst.msk [vmem:[%s1 + $0xe0] sm:$0xff] %vm458, %v454
  %488 = vst.msk [vmem:[%s1 + $0xe8] sm:$0xff] %vm458, %v455
  %489 = vst.msk [vmem:[%s1 + $0xf0] sm:$0xff] %vm458, %v456
  %490 = vst.msk [vmem:[%s1 + $0xf8] sm:$0xff] %vm458, %v457
  // Predicated region
  $region6: #{tpu_custom_call.1} parent=0 // pred_check
    _
  $region7: #{tpu_custom_call.1} parent=0 // pred_check_branch
    %492 = sbr.rel (0) target = $region9
  $region8: #{tpu_custom_call.1} parent=0 // pred_region
    _
  $region9: #{tpu_custom_call.1} parent=0 // pred_fallthru
    _
  // Predicated region
  $region10: #{tpu_custom_call.1} parent=0 // pred_check
    _
  $region11: #{tpu_custom_call.1} parent=0 // pred_check_branch
    %494 = sbr.rel (0) target = $region13
  $region12: #{tpu_custom_call.1} parent=0 // pred_region
    _
  $region13: #{tpu_custom_call.1} parent=0 // pred_fallthru
    _

</llo_original>
